<compile_context>
chip_gen: v6e
topology: v6e:2x2x1
jax: 0.10.0
libtpu: 0.0.40
codegen_flags: <defaults>
</compile_context>

<pallas_src>
import functools
import math

import jax
import jax.numpy as jnp
from jax import lax
from jax.experimental import pallas as pl
from jax.experimental.pallas import tpu as pltpu


def _round_up(x, m):
    return ((x + m - 1) // m) * m


def _attention_kernel(x_ref, w_qkv_ref, bias_ref, score_ref, att_ref, *, scale):
    d_pad = x_ref.shape[-1]

    # Fused QKV projection (bias folded in via the ones column of x / bias row of W):
    # one wide MXU matmul, bf16 operands, f32 accumulation.  Lane-aligned slices.
    proj = jnp.dot(x_ref[...], w_qkv_ref[...], preferred_element_type=jnp.float32)
    k = proj[:, 0 * d_pad:1 * d_pad]
    q = proj[:, 1 * d_pad:2 * d_pad]
    v = proj[:, 2 * d_pad:3 * d_pad]

    # score = (k @ q^T) / sqrt(d): contract the hidden axes directly (no host/kernel
    # transpose).  NOTE(review item 8): if MLIR shows an XLU vxpose of q here, swap the
    # formulation; at 16x128 tiles it is negligible either way.
    raw = lax.dot_general(
        k.astype(jnp.bfloat16), q.astype(jnp.bfloat16),
        dimension_numbers=(((1,), (1,)), ((), ())),
        preferred_element_type=jnp.float32) * scale

    bias = bias_ref[...].astype(jnp.float32)          # 0 where visible, -1e30 where masked

    # Returned score keeps the module's masked_fill(mask == 0, -inf) semantics.
    score_ref[...] = jnp.where(bias < jnp.float32(-1e20), jnp.float32(-jnp.inf), raw)

    # Softmax path: additive finite bias (no NaN on fully-masked / padded rows).
    s = raw + bias
    m = jnp.max(s, axis=1, keepdims=True)
    e = jnp.exp(s - m)
    denom = jnp.sum(e, axis=1, keepdims=True)
    p = e * pl.reciprocal(denom, approx=True)          # EUP vrcp: frees VALU slots

    att_ref[...] = jnp.dot(p.astype(jnp.bfloat16), v.astype(jnp.bfloat16),
                           preferred_element_type=jnp.float32)


def pack_qkv_params(wk, bk, wq, bq, wv, bv):
    """Build the fused, pre-transposed (d_pad, 3*d_pad) bf16 QKV weight slab ONCE.

    Layout: column blocks [k | q | v], each d_pad wide; row `d` holds the bias
    (paired with a ones column appended to x inside the forward wrapper).
    """
    d = wk.shape[0]
    d_pad = _round_up(d + 1, 128)       # +1 guarantees room for the bias row
    w = jnp.zeros((d_pad, 3 * d_pad), jnp.float32)
    for idx, (wm, bm) in enumerate(((wk, bk), (wq, bq), (wv, bv))):
        w = w.at[:d, idx * d_pad:idx * d_pad + d].set(wm.T.astype(jnp.float32))
        w = w.at[d, idx * d_pad:idx * d_pad + d].set(bm.reshape(d).astype(jnp.float32))
    return w.astype(jnp.bfloat16)


def attention_forward(x, w_qkv_bf16, mask):
    """Pallas forward of the PyTorch Attention module. Returns (score, att_score)."""
    n, d = x.shape
    d_pad = w_qkv_bf16.shape[0]
    # Row axis only needs sublane padding (16 for the bf16 input); lane axis stays d_pad.
    n_row = _round_up(max(n, 16), 16)

    x_pad = jnp.zeros((n_row, d_pad), jnp.bfloat16)
    x_pad = x_pad.at[:n, :d].set(x.astype(jnp.bfloat16))
    x_pad = x_pad.at[:n, d].set(jnp.bfloat16(1.0))     # ones column -> bias via the MXU

    # Additive mask bias (bf16, tiny): 0 where visible, -1e30 where masked.  Padded
    # query columns are also -1e30 so padded keys never receive attention weight.
    bias = jnp.full((n_row, n_row), -1e30, jnp.float32)
    bias = bias.at[:n, :n].set(jnp.where(mask == 0, jnp.float32(-1e30), jnp.float32(0.0)))
    bias = bias.astype(jnp.bfloat16)

    kernel = functools.partial(_attention_kernel, scale=1.0 / math.sqrt(d))
    vmem = pl.BlockSpec(memory_space=pltpu.MemorySpace.VMEM)

    score_pad, att_pad = pl.pallas_call(
        kernel,
        out_shape=(
            jax.ShapeDtypeStruct((n_row, n_row), jnp.float32),   # masked score
            jax.ShapeDtypeStruct((n_row, d_pad), jnp.float32),   # attention output
        ),
        in_specs=[vmem, vmem, vmem],
        out_specs=(vmem, vmem),
    )(x_pad, w_qkv_bf16, bias)

    return score_pad[:n, :n], att_pad[:n, :d]


def _reference(x, wk, bk, wq, bq, wv, bv, mask):
    """Pure-JAX f32 reference mirroring the PyTorch module."""
    k = x @ wk.T + bk
    q = x @ wq.T + bq
    v = x @ wv.T + bv
    score = k @ q.T / math.sqrt(k.shape[-1])
    score = jnp.where(mask == 0, -jnp.inf, score)
    att = jax.nn.softmax(score, axis=1)
    return score, att @ v


if __name__ == "__main__":
    # Small shapes consistent with the module's forward: inputs (n, d), mask (n, n).
    n, d = 8, 32
    key = jax.random.PRNGKey(0)
    kx, kwk, kbk, kwq, kbq, kwv, kbv = jax.random.split(key, 7)

    x = jax.random.normal(kx, (n, d), dtype=jnp.float32)

    # Deterministic parameter init (uniform(-1/sqrt(d), 1/sqrt(d)), like nn.Linear).
    bound = 1.0 / math.sqrt(d)
    init = lambda k_, shape: jax.random.uniform(k_, shape, jnp.float32, -bound, bound)
    wk, wq, wv = init(kwk, (d, d)), init(kwq, (d, d)), init(kwv, (d, d))
    bk, bq, bv = init(kbk, (1, d)), init(kbq, (1, d)), init(kbv, (1, d))

    # Causal (lower-triangular) mask, as in the module usage snippet.
    mask = jnp.tril(jnp.ones((n, n), dtype=jnp.float32))

    # Weight slab built ONCE (parameter-load time), not per forward call.
    w_qkv = pack_qkv_params(wk, bk, wq, bq, wv, bv)

    score, att_score = attention_forward(x, w_qkv, mask)
    jax.block_until_ready((score, att_score))

    ref_score, ref_att = _reference(x, wk, bk, wq, bq, wv, bv, mask)

    # -inf mask pattern must match exactly; values compared at bf16-level tolerance
    # (MXU operands are bf16, accumulation f32, approx reciprocal in softmax).
    finite = jnp.isfinite(ref_score)
    assert bool(jnp.all(jnp.isfinite(score) == finite)), "masked -inf pattern mismatch"
    assert bool(jnp.allclose(jnp.where(finite, score, 0.0),
                             jnp.where(finite, ref_score, 0.0),
                             atol=5e-2, rtol=5e-2)), "score mismatch"
    assert bool(jnp.allclose(att_score, ref_att, atol=5e-2, rtol=5e-2)), "att mismatch"

    print("KERNEL_OK")
</pallas_src>

<mosaic_0001>
module attributes {stable_mosaic.version = 11 : i64} {
  func.func @_attention_kernel(%arg0: memref<16x128xbf16, #tpu.memory_space<vmem>>, %arg1: memref<128x384xbf16, #tpu.memory_space<vmem>>, %arg2: memref<16x16xbf16, #tpu.memory_space<vmem>>, %arg3: memref<16x16xf32, #tpu.memory_space<vmem>>, %arg4: memref<16x128xf32, #tpu.memory_space<vmem>>) attributes {dimension_semantics = [], scalar_prefetch = 0 : i64, scratch_operands = 0 : i64, tpu.core_type = #tpu.core_type<tc>} {
    %c0 = arith.constant 0 : index
    %c0_0 = arith.constant 0 : index
    %0 = vector.load %arg0[%c0, %c0_0] : memref<16x128xbf16, #tpu.memory_space<vmem>>, vector<16x128xbf16>
    %c0_1 = arith.constant 0 : index
    %c0_2 = arith.constant 0 : index
    %1 = vector.load %arg1[%c0_1, %c0_2] : memref<128x384xbf16, #tpu.memory_space<vmem>>, vector<128x384xbf16>
    %cst = arith.constant dense<0.000000e+00> : vector<16x384xf32>
    %2 = tpu.matmul %0, %1, %cst {dimension_numbers = #tpu.dot_dimension_numbers<[1], [0], [0], [1], [0, 0, 1, 1], [], []>} : vector<16x128xbf16>, vector<128x384xbf16>, vector<16x384xf32> -> vector<16x384xf32>
    %3 = vector.extract_strided_slice %2 {offsets = [0, 0], sizes = [16, 128], strides = [1, 1]} : vector<16x384xf32> to vector<16x128xf32>
    %4 = vector.extract_strided_slice %2 {offsets = [0, 128], sizes = [16, 128], strides = [1, 1]} : vector<16x384xf32> to vector<16x128xf32>
    %5 = vector.extract_strided_slice %2 {offsets = [0, 256], sizes = [16, 128], strides = [1, 1]} : vector<16x384xf32> to vector<16x128xf32>
    %6 = arith.truncf %3 : vector<16x128xf32> to vector<16x128xbf16>
    %7 = arith.truncf %4 : vector<16x128xf32> to vector<16x128xbf16>
    %cst_3 = arith.constant dense<0.000000e+00> : vector<16x16xf32>
    %8 = tpu.matmul %6, %7, %cst_3 {dimension_numbers = #tpu.dot_dimension_numbers<[1], [1], [0], [0], [0, 0, 1, 0], [], []>} : vector<16x128xbf16>, vector<16x128xbf16>, vector<16x16xf32> -> vector<16x16xf32>
    %cst_4 = arith.constant 0.176776692 : f32
    %9 = vector.broadcast %cst_4 : f32 to vector<16x16xf32>
    %10 = arith.mulf %8, %9 : vector<16x16xf32>
    %c0_5 = arith.constant 0 : index
    %c0_6 = arith.constant 0 : index
    %11 = vector.load %arg2[%c0_5, %c0_6] : memref<16x16xbf16, #tpu.memory_space<vmem>>, vector<16x16xbf16>
    %12 = arith.extf %11 : vector<16x16xbf16> to vector<16x16xf32>
    %cst_7 = arith.constant -1.000000e+20 : f32
    %13 = vector.broadcast %cst_7 : f32 to vector<16x16xf32>
    %14 = arith.cmpf olt, %12, %13 : vector<16x16xf32>
    %cst_8 = arith.constant 0xFF800000 : f32
    %15 = vector.broadcast %cst_8 : f32 to vector<16x16xf32>
    %16 = arith.select %14, %15, %10 : vector<16x16xi1>, vector<16x16xf32>
    %c0_9 = arith.constant 0 : index
    %c0_10 = arith.constant 0 : index
    %17 = vector.load %arg3[%c0_9, %c0_10] : memref<16x16xf32, #tpu.memory_space<vmem>>, vector<16x16xf32>
    tpu.vector_store %arg3[%c0_9, %c0_10], %16 {strides = array<i32>} : memref<16x16xf32, #tpu.memory_space<vmem>>, vector<16x16xf32>,
    %18 = arith.addf %10, %12 : vector<16x16xf32>
    %cst_11 = arith.constant dense<0xFF800000> : vector<16xf32>
    %19 = vector.multi_reduction <maximumf>, %18, %cst_11 [1] : vector<16x16xf32> to vector<16xf32>
    %20 = vector.shape_cast %19 : vector<16xf32> to vector<16x1xf32>
    %21 = vector.broadcast %20 : vector<16x1xf32> to vector<16x16xf32>
    %22 = arith.subf %18, %21 : vector<16x16xf32>
    %23 = math.exp %22 : vector<16x16xf32>
    %cst_12 = arith.constant dense<0.000000e+00> : vector<16xf32>
    %24 = vector.multi_reduction <add>, %23, %cst_12 [1] : vector<16x16xf32> to vector<16xf32>
    %25 = vector.shape_cast %24 : vector<16xf32> to vector<16x1xf32>
    %26 = tpu.reciprocal %25 {approx = true} : vector<16x1xf32> -> vector<16x1xf32>
    %27 = vector.broadcast %26 : vector<16x1xf32> to vector<16x16xf32>
    %28 = arith.mulf %23, %27 : vector<16x16xf32>
    %29 = arith.truncf %28 : vector<16x16xf32> to vector<16x16xbf16>
    %30 = arith.truncf %5 : vector<16x128xf32> to vector<16x128xbf16>
    %cst_13 = arith.constant dense<0.000000e+00> : vector<16x128xf32>
    %31 = tpu.matmul %29, %30, %cst_13 {dimension_numbers = #tpu.dot_dimension_numbers<[1], [0], [0], [1], [0, 0, 1, 1], [], []>} : vector<16x16xbf16>, vector<16x128xbf16>, vector<16x128xf32> -> vector<16x128xf32>
    %c0_14 = arith.constant 0 : index
    %c0_15 = arith.constant 0 : index
    %32 = vector.load %arg4[%c0_14, %c0_15] : memref<16x128xf32, #tpu.memory_space<vmem>>, vector<16x128xf32>
    tpu.vector_store %arg4[%c0_14, %c0_15], %31 {strides = array<i32>} : memref<16x128xf32, #tpu.memory_space<vmem>>, vector<16x128xf32>,
    return
  }
}

</mosaic_0001>

<llo_original>
// kernel: tpu_custom_call.1
$region0: #{tpu_custom_call.1}
  #allocation0 [shape = 'u32[]', space=smem, size = 0x4, offset = 0x4, fixed_abs, tag = 'smem constant byte address 0x4 - core index']
  #allocation1 [shape = 'u32[144,128]{1,0:T(1,128)}', space=vmem, size = 0x12000, scoped, tag = 'internal scratch']
  %s0 = inlined_call_operand.hbm [shape: bf16[16,128], index: 0, kind: input, shape index: {}]
  %s1 = inlined_call_operand.hbm [shape: bf16[128,384], index: 1, kind: input, shape index: {}]
  %s2 = inlined_call_operand.hbm [shape: bf16[16,16], index: 2, kind: input, shape index: {}]
  %s3 = inlined_call_operand.hbm [shape: f32[16,16], index: 3, kind: output, shape index: {0}]
  %s4 = inlined_call_operand.hbm [shape: f32[16,128], index: 4, kind: output, shape index: {1}]
  %5 = xla_tuple %s3, %s4
  %s6 = sld [smem:[#allocation0]]
  $region42: #{tpu_custom_call.1} parent=0
    _
  %s8 = ssub.s32 1, %s6
  %s9 = scalar_select 0, %s8, %s6
  $region1: #{tpu_custom_call.1} parent=0
    #allocation2 [shape = 'u8[4096]{0}', space=vmem, size = 0x1000, scoped, tag = 'input window, operand 0, single buffered']
    #allocation3 [shape = 's32[1]{0}', space=sflag, size = 0x4, scoped, tag = 'scoped memory for tpu_custom_call.1']
    #allocation4 [shape = 's32[1]{0}', space=sflag, size = 0x4, scoped, tag = 'scoped memory for tpu_custom_call.1']
    #allocation5 [shape = 'u8[98304]{0}', space=vmem, size = 0x18000, scoped, tag = 'input window, operand 1, single buffered']
    #allocation6 [shape = 's32[1]{0}', space=sflag, size = 0x4, scoped, tag = 'scoped memory for tpu_custom_call.1']
    #allocation7 [shape = 'u8[4096]{0}', space=vmem, size = 0x1000, scoped, tag = 'input window, operand 2, single buffered']
    #allocation8 [shape = 'u8[8192]{0}', space=vmem, size = 0x2000, scoped, tag = 'output window, operand 0, single buffered']
    #allocation9 [shape = 'u8[8192]{0}', space=vmem, size = 0x2000, scoped, tag = 'output window, operand 1, single buffered']
    #allocation10 [shape = 's32[1]{0}', space=sflag, size = 0x4, scoped, tag = 'scoped memory for tpu_custom_call.1']
    %10 = vsyncpa [#allocation3], 0
    %11 = vsyncpa [#allocation6], 0
    %12 = vsyncpa [#allocation4], 0
    %13 = vsyncpa [#allocation10], 0
    // Predicated region
    $region2: #{tpu_custom_call.1} parent=1 // pred_check
      _
    $region3: #{tpu_custom_call.1} parent=1 // pred_check_branch
      %15 = sbr.rel (0) target = $region5
    $region4: #{tpu_custom_call.1} parent=1 // pred_region
      %s17 = ssub.s32 128, 128
      %18 = vsyncadd [#allocation3], %s17
      %s19 = sshll.u32 [#allocation2], 4
      %s20 = int_to_ptr.vmem [resolvable:$true] %s19
      %25 = dma.hbm_to_vmem [thread:$0]  %s0, 128, %s20, [#allocation3], 64, 64, 4
    $region5: #{tpu_custom_call.1} parent=1 // pred_fallthru
      _
    // Predicated region
    $region6: #{tpu_custom_call.1} parent=1 // pred_check
      _
    $region7: #{tpu_custom_call.1} parent=1 // pred_check_branch
      %27 = sbr.rel (0) target = $region9
    $region8: #{tpu_custom_call.1} parent=1 // pred_region
      %s29 = ssub.s32 3072, 3072
      %30 = vsyncadd [#allocation6], %s29
      %s31 = sshll.u32 [#allocation5], 4
      %s32 = int_to_ptr.vmem [resolvable:$true] %s31
      %37 = dma.hbm_to_vmem [thread:$0]  %s1, 3072, %s32, [#allocation6], 192, 192, 12
    $region9: #{tpu_custom_call.1} parent=1 // pred_fallthru
      _
    // Predicated region
    $region10: #{tpu_custom_call.1} parent=1 // pred_check
      _
    $region11: #{tpu_custom_call.1} parent=1 // pred_check_branch
      %39 = sbr.rel (0) target = $region13
    $region12: #{tpu_custom_call.1} parent=1 // pred_region
      %s41 = ssub.s32 128, 128
      %42 = vsyncadd [#allocation6], %s41
      %s43 = sshll.u32 [#allocation7], 4
      %s44 = int_to_ptr.vmem [resolvable:$true] %s43
      %49 = dma.hbm_to_vmem [thread:$0]  %s2, 128, %s44, [#allocation6], 64, 64, 4
    $region13: #{tpu_custom_call.1} parent=1 // pred_fallthru
      _
    // Predicated region
    $region14: #{tpu_custom_call.1} parent=1 // pred_check
      _
    $region15: #{tpu_custom_call.1} parent=1 // pred_check_branch
      %51 = sbr.rel (0) target = $region17
    $region16: #{tpu_custom_call.1} parent=1 // pred_region
      %52 = dma.done [#allocation3], 128
    $region17: #{tpu_custom_call.1} parent=1 // pred_fallthru
      _
    // Predicated region
    $region18: #{tpu_custom_call.1} parent=1 // pred_check
      _
    $region19: #{tpu_custom_call.1} parent=1 // pred_check_branch
      %54 = sbr.rel (0) target = $region21
    $region20: #{tpu_custom_call.1} parent=1 // pred_region
      %55 = dma.done [#allocation6], 3072
    $region21: #{tpu_custom_call.1} parent=1 // pred_fallthru
      _
    // Predicated region
    $region22: #{tpu_custom_call.1} parent=1 // pred_check
      _
    $region23: #{tpu_custom_call.1} parent=1 // pred_check_branch
      %57 = sbr.rel (0) target = $region25
    $region24: #{tpu_custom_call.1} parent=1 // pred_region
      %58 = dma.done [#allocation6], 128
    $region25: #{tpu_custom_call.1} parent=1 // pred_fallthru
      _
    %v60 = vld [vmem:[#allocation2] sm:$0xf]
    %v61 = vld [vmem:[#allocation2 + $0x4] sm:$0xf]
    %v62 = vld [vmem:[#allocation5] sm:$0xff]
    %v63 = vld [vmem:[#allocation5 + $0x8] sm:$0xf]
    %v64 = vld [vmem:[#allocation5 + $0xc] sm:$0xff]
    %v65 = vld [vmem:[#allocation5 + $0x14] sm:$0xf]
    %v66 = vld [vmem:[#allocation5 + $0x18] sm:$0xff]
    %v67 = vld [vmem:[#allocation5 + $0x20] sm:$0xf]
    %v68 = vld [vmem:[#allocation5 + $0x24] sm:$0xff]
    %v69 = vld [vmem:[#allocation5 + $0x2c] sm:$0xf]
    %v70 = vld [vmem:[#allocation5 + $0x30] sm:$0xff]
    %v71 = vld [vmem:[#allocation5 + $0x38] sm:$0xf]
    %v72 = vld [vmem:[#allocation5 + $0x3c] sm:$0xff]
    %v73 = vld [vmem:[#allocation5 + $0x44] sm:$0xf]
    %v74 = vld [vmem:[#allocation5 + $0x48] sm:$0xff]
    %v75 = vld [vmem:[#allocation5 + $0x50] sm:$0xf]
    %v76 = vld [vmem:[#allocation5 + $0x54] sm:$0xff]
    %v77 = vld [vmem:[#allocation5 + $0x5c] sm:$0xf]
    %v78 = vld [vmem:[#allocation5 + $0x60] sm:$0xff]
    %v79 = vld [vmem:[#allocation5 + $0x68] sm:$0xf]
    %v80 = vld [vmem:[#allocation5 + $0x6c] sm:$0xff]
    %v81 = vld [vmem:[#allocation5 + $0x74] sm:$0xf]
    %v82 = vld [vmem:[#allocation5 + $0x78] sm:$0xff]
    %v83 = vld [vmem:[#allocation5 + $0x80] sm:$0xf]
    %v84 = vld [vmem:[#allocation5 + $0x84] sm:$0xff]
    %v85 = vld [vmem:[#allocation5 + $0x8c] sm:$0xf]
    %v86 = vld [vmem:[#allocation5 + $0x90] sm:$0xff]
    %v87 = vld [vmem:[#allocation5 + $0x98] sm:$0xf]
    %v88 = vld [vmem:[#allocation5 + $0x9c] sm:$0xff]
    %v89 = vld [vmem:[#allocation5 + $0xa4] sm:$0xf]
    %v90 = vld [vmem:[#allocation5 + $0xa8] sm:$0xff]
    %v91 = vld [vmem:[#allocation5 + $0xb0] sm:$0xf]
    %v92 = vld [vmem:[#allocation5 + $0xb4] sm:$0xff]
    %v93 = vld [vmem:[#allocation5 + $0xbc] sm:$0xf]
    %v96 = vunpack.c.l.b16 %v60
    %v97 = vunpack.c.l.b16 %v61
    %v98 = vpack.c.b16 %v97, %v96
    %v132 = vunpack.c.l.b16 %v62
    %v133 = vunpack.c.h.b16 %v62
    %v134 = vunpack.c.l.b16 %v63
    %v135 = vunpack.c.l.b16 %v64
    %v136 = vunpack.c.h.b16 %v64
    %v137 = vunpack.c.l.b16 %v65
    %v138 = vunpack.c.l.b16 %v66
    %v139 = vunpack.c.h.b16 %v66
    %v140 = vunpack.c.l.b16 %v67
    %v141 = vunpack.c.l.b16 %v68
    %v142 = vunpack.c.h.b16 %v68
    %v143 = vunpack.c.l.b16 %v69
    %v144 = vunpack.c.l.b16 %v70
    %v145 = vunpack.c.h.b16 %v70
    %v146 = vunpack.c.l.b16 %v71
    %v147 = vunpack.c.l.b16 %v72
    %v148 = vunpack.c.h.b16 %v72
    %v149 = vunpack.c.l.b16 %v73
    %v150 = vunpack.c.l.b16 %v74
    %v151 = vunpack.c.h.b16 %v74
    %v152 = vunpack.c.l.b16 %v75
    %v153 = vunpack.c.l.b16 %v76
    %v154 = vunpack.c.h.b16 %v76
    %v155 = vunpack.c.l.b16 %v77
    %v156 = vunpack.c.l.b16 %v78
    %v157 = vunpack.c.h.b16 %v78
    %v158 = vunpack.c.l.b16 %v79
    %v159 = vunpack.c.l.b16 %v80
    %v160 = vunpack.c.h.b16 %v80
    %v161 = vunpack.c.l.b16 %v81
    %v162 = vunpack.c.l.b16 %v82
    %v163 = vunpack.c.h.b16 %v82
    %v164 = vunpack.c.l.b16 %v83
    %v165 = vunpack.c.l.b16 %v84
    %v166 = vunpack.c.h.b16 %v84
    %v167 = vunpack.c.l.b16 %v85
    %v168 = vunpack.c.l.b16 %v86
    %v169 = vunpack.c.h.b16 %v86
    %v170 = vunpack.c.l.b16 %v87
    %v171 = vunpack.c.l.b16 %v88
    %v172 = vunpack.c.h.b16 %v88
    %v173 = vunpack.c.l.b16 %v89
    %v174 = vunpack.c.l.b16 %v90
    %v175 = vunpack.c.h.b16 %v90
    %v176 = vunpack.c.l.b16 %v91
    %v177 = vunpack.c.l.b16 %v92
    %v178 = vunpack.c.h.b16 %v92
    %v179 = vunpack.c.l.b16 %v93
    %v180 = vpack.c.b16 %v135, %v132
    %v181 = vpack.c.b16 %v136, %v133
    %v182 = vpack.c.b16 %v137, %v134
    %v183 = vpack.c.b16 %v141, %v138
    %v184 = vpack.c.b16 %v142, %v139
    %v185 = vpack.c.b16 %v143, %v140
    %v186 = vpack.c.b16 %v147, %v144
    %v187 = vpack.c.b16 %v148, %v145
    %v188 = vpack.c.b16 %v149, %v146
    %v189 = vpack.c.b16 %v153, %v150
    %v190 = vpack.c.b16 %v154, %v151
    %v191 = vpack.c.b16 %v155, %v152
    %v192 = vpack.c.b16 %v159, %v156
    %v193 = vpack.c.b16 %v160, %v157
    %v194 = vpack.c.b16 %v161, %v158
    %v195 = vpack.c.b16 %v165, %v162
    %v196 = vpack.c.b16 %v166, %v163
    %v197 = vpack.c.b16 %v167, %v164
    %v198 = vpack.c.b16 %v171, %v168
    %v199 = vpack.c.b16 %v172, %v169
    %v200 = vpack.c.b16 %v173, %v170
    %v201 = vpack.c.b16 %v177, %v174
    %v202 = vpack.c.b16 %v178, %v175
    %v203 = vpack.c.b16 %v179, %v176
    %228 = vmatprep.subr.bf16.mxu0 %v202
    %229 = vmatpush1.bf16.msra.mxu0 %v201
    %230 = vmatprep.subr.bf16.mxu0 %v199
    %231 = vmatpush1.bf16.msra.mxu0 %v198
    %232 = vmatprep.subr.bf16.mxu0 %v196
    %233 = vmatpush1.bf16.msra.mxu0 %v195
    %234 = vmatprep.subr.bf16.mxu0 %v193
    %235 = vmatpush1.bf16.msra.mxu0 %v192
    %236 = vmatprep.subr.bf16.mxu0 %v190
    %237 = vmatpush1.bf16.msra.mxu0 %v189
    %238 = vmatprep.subr.bf16.mxu0 %v187
    %239 = vmatpush1.bf16.msra.mxu0 %v186
    %240 = vmatprep.subr.bf16.mxu0 %v184
    %241 = vmatpush1.bf16.msra.mxu0 %v183
    %242 = vmatprep.subr.bf16.mxu0 %v181
    %243 = vmatpush1.bf16.msra.mxu0 %v180
    %244 = vmatprep.subr.bf16.mxu0 0
    %245 = vmatpush2.bf16.msra.mxu0 0
    %246 = vmatprep.subr.bf16.mxu0 0
    %247 = vmatpush2.bf16.msra.mxu0 0
    %248 = vmatprep.subr.bf16.mxu0 0
    %249 = vmatpush2.bf16.msra.mxu0 0
    %250 = vmatprep.subr.bf16.mxu0 0
    %251 = vmatpush2.bf16.msra.mxu0 0
    %252 = vmatprep.subr.bf16.mxu0 0
    %253 = vmatpush2.bf16.msra.mxu0 0
    %254 = vmatprep.subr.bf16.mxu0 0
    %255 = vmatpush2.bf16.msra.mxu0 0
    %256 = vmatprep.subr.bf16.mxu0 0
    %257 = vmatpush2.bf16.msra.mxu0 0
    %258 = vmatprep.subr.bf16.mxu0 0
    %259 = vmatpush2.bf16.msra.mxu0 0
    %260 = vmatprep.mubr.bf16.mxu0 0
    %261 = vmatmul.mubr.bf16.gmra.mxu0 %v98
    %v262 = vpop.f32.mrf.mxu0
    %v263 = vadd.f32 0.0, %v262
    %v264 = vpop.f32.mrf.mxu0
    %v265 = vadd.f32 0.0, %v264
    %v266 = vpop.f32.mrf.mxu0
    %v267 = vadd.f32 0.0, %v266
    %v268 = vpop.f32.mrf.mxu0
    %v269 = vadd.f32 0.0, %v268
    %270 = vdwg.mxu0
    %271 = vmatprep.subr.bf16.mxu0 0
    %272 = vmatpush1.bf16.msra.mxu0 %v203
    %273 = vmatprep.subr.bf16.mxu0 0
    %274 = vmatpush1.bf16.msra.mxu0 %v200
    %275 = vmatprep.subr.bf16.mxu0 0
    %276 = vmatpush1.bf16.msra.mxu0 %v197
    %277 = vmatprep.subr.bf16.mxu0 0
    %278 = vmatpush1.bf16.msra.mxu0 %v194
    %279 = vmatprep.subr.bf16.mxu0 0
    %280 = vmatpush1.bf16.msra.mxu0 %v191
    %281 = vmatprep.subr.bf16.mxu0 0
    %282 = vmatpush1.bf16.msra.mxu0 %v188
    %283 = vmatprep.subr.bf16.mxu0 0
    %284 = vmatpush1.bf16.msra.mxu0 %v185
    %285 = vmatprep.subr.bf16.mxu0 0
    %286 = vmatpush1.bf16.msra.mxu0 %v182
    %287 = vmatprep.subr.bf16.mxu0 0
    %288 = vmatpush2.bf16.msra.mxu0 0
    %289 = vmatprep.subr.bf16.mxu0 0
    %290 = vmatpush2.bf16.msra.mxu0 0
    %291 = vmatprep.subr.bf16.mxu0 0
    %292 = vmatpush2.bf16.msra.mxu0 0
    %293 = vmatprep.subr.bf16.mxu0 0
    %294 = vmatpush2.bf16.msra.mxu0 0
    %295 = vmatprep.subr.bf16.mxu0 0
    %296 = vmatpush2.bf16.msra.mxu0 0
    %297 = vmatprep.subr.bf16.mxu0 0
    %298 = vmatpush2.bf16.msra.mxu0 0
    %299 = vmatprep.subr.bf16.mxu0 0
    %300 = vmatpush2.bf16.msra.mxu0 0
    %301 = vmatprep.subr.bf16.mxu0 0
    %302 = vmatpush2.bf16.msra.mxu0 0
    %303 = vmatprep.mubr.bf16.mxu0 0
    %304 = vmatmul.mubr.bf16.gmra.mxu0 %v98
    %v305 = vpop.f32.mrf.mxu0
    %v306 = vadd.f32 0.0, %v305
    %v307 = vpop.f32.mrf.mxu0
    %v308 = vpop.f32.mrf.mxu0
    %v309 = vadd.f32 0.0, %v308
    %v310 = vpop.f32.mrf.mxu0
    %311 = vdwg.mxu0
    %v312 = vpack.c.bf16 %v267, %v263
    %v313 = vpack.c.bf16 %v269, %v265
    %314 = vmatprep.subr.bf16.mxu0 0
    %315 = vmatpush1.bf16.xpose.msra.mxu0 0
    %316 = vmatprep.subr.bf16.mxu0 0
    %317 = vmatpush1.bf16.xpose.msra.mxu0 0
    %318 = vmatprep.subr.bf16.mxu0 0
    %319 = vmatpush1.bf16.xpose.msra.mxu0 0
    %320 = vmatprep.subr.bf16.mxu0 0
    %321 = vmatpush1.bf16.xpose.msra.mxu0 0
    %322 = vmatprep.subr.bf16.mxu0 0
    %323 = vmatpush1.bf16.xpose.msra.mxu0 0
    %324 = vmatprep.subr.bf16.mxu0 0
    %325 = vmatpush1.bf16.xpose.msra.mxu0 0
    %326 = vmatprep.subr.bf16.mxu0 0
    %327 = vmatpush1.bf16.xpose.msra.mxu0 0
    %328 = vmatprep.subr.bf16.mxu0 0
    %329 = vmatpush1.bf16.xpose.msra.mxu0 %v313
    %330 = vmatprep.subr.bf16.mxu0 0
    %331 = vmatpush2.bf16.xpose.msra.mxu0 0
    %332 = vmatprep.subr.bf16.mxu0 0
    %333 = vmatpush2.bf16.xpose.msra.mxu0 0
    %334 = vmatprep.subr.bf16.mxu0 0
    %335 = vmatpush2.bf16.xpose.msra.mxu0 0
    %336 = vmatprep.subr.bf16.mxu0 0
    %337 = vmatpush2.bf16.xpose.msra.mxu0 0
    %338 = vmatprep.subr.bf16.mxu0 0
    %339 = vmatpush2.bf16.xpose.msra.mxu0 0
    %340 = vmatprep.subr.bf16.mxu0 0
    %341 = vmatpush2.bf16.xpose.msra.mxu0 0
    %342 = vmatprep.subr.bf16.mxu0 0
    %343 = vmatpush2.bf16.xpose.msra.mxu0 0
    %344 = vmatprep.subr.bf16.mxu0 0
    %345 = vmatpush2.bf16.xpose.msra.mxu0 0
    %346 = vmatprep.mubr.bf16.mxu0 0
    %347 = vmatmul.mubr.bf16.gmra.mxu0 %v312
    %v348 = vpop.f32.mrf.mxu0
    %v349 = vadd.f32 0.0, %v348
    %v350 = vpop.f32.mrf.mxu0
    %v351 = vpop.f32.mrf.mxu0
    %v352 = vadd.f32 0.0, %v351
    %v353 = vpop.f32.mrf.mxu0
    %354 = vdwg.mxu0
    %v355 = vmul.f32 %v349, 0.17677669
    %v356 = vmul.f32 %v352, 0.17677669
    %v357 = vld [vmem:[#allocation7] sm:$0xf]
    %v358 = vld [vmem:[#allocation7 + $0x4] sm:$0xf]
    %v359 = vunpack.c.l.bf16 %v357
    %v360 = vunpack.c.l.bf16 %v358
    %vm361 = vcmp.lt.f32.partialorder %v359, -1e+20
    %vm362 = vcmp.lt.f32.partialorder %v360, -1e+20
    %v363 = vsel %vm361, -inf, %v355
    %v364 = vsel %vm362, -inf, %v356
    %vm365 = vcmask 130048
    %366 = vst.msk [vmem:[#allocation8] sm:$0xff] %vm365, %v363
    %367 = vst.msk [vmem:[#allocation8 + $0x8] sm:$0xff] %vm365, %v364
    %v368 = vadd.f32 %v355, %v359
    %v369 = vadd.f32 %v356, %v360
    %v370 = vsel %vm365, %v368, -inf
    %371 = vmax.xlane.f32.xlu0 %v370
    %v372 = vpop.xlane.xlu0 %371
    %v373 = vsel %vm365, %v369, -inf
    %374 = vmax.xlane.f32.xlu0 %v373
    %v375 = vpop.xlane.xlu0 %374
    %v376 = vsub.f32 %v368, %v372
    %v377 = vsub.f32 %v369, %v375
    %v378 = vmul.f32 %v376, 1.442695
    %v379 = vpow.pop %v378
    %v380 = vmul.f32 %v377, 1.442695
    %v381 = vpow.pop %v380
    %v382 = vsel %vm365, %v379, 0.0
    %383 = vadd.xlane.f32.xlu0 %v382
    %v384 = vpop.xlane.xlu0 %383
    %v385 = vsel %vm365, %v381, 0.0
    %386 = vadd.xlane.f32.xlu0 %v385
    %v387 = vpop.xlane.xlu0 %386
    %v388 = vrcp.pop %v384
    %v389 = vrcp.pop %v387
    %v390 = vmul.f32 %v379, %v388
    %v391 = vmul.f32 %v381, %v389
    %v392 = vpack.c.bf16 %v391, %v390
    %v393 = vpack.c.bf16 %v309, %v306
    %v395 = vsel %vm365, %v392, 0
    %397 = vmatprep.subr.bf16.mxu0 0
    %398 = vmatpush1.bf16.msra.mxu0 0
    %399 = vmatprep.subr.bf16.mxu0 0
    %400 = vmatpush1.bf16.msra.mxu0 0
    %401 = vmatprep.subr.bf16.mxu0 0
    %402 = vmatpush1.bf16.msra.mxu0 0
    %403 = vmatprep.subr.bf16.mxu0 0
    %404 = vmatpush1.bf16.msra.mxu0 0
    %405 = vmatprep.subr.bf16.mxu0 0
    %406 = vmatpush1.bf16.msra.mxu0 0
    %407 = vmatprep.subr.bf16.mxu0 0
    %408 = vmatpush1.bf16.msra.mxu0 0
    %409 = vmatprep.subr.bf16.mxu0 0
    %410 = vmatpush1.bf16.msra.mxu0 0
    %411 = vmatprep.subr.bf16.mxu0 0
    %412 = vmatpush1.bf16.msra.mxu0 %v393
    %413 = vmatprep.subr.bf16.mxu0 0
    %414 = vmatpush2.bf16.msra.mxu0 0
    %415 = vmatprep.subr.bf16.mxu0 0
    %416 = vmatpush2.bf16.msra.mxu0 0
    %417 = vmatprep.subr.bf16.mxu0 0
    %418 = vmatpush2.bf16.msra.mxu0 0
    %419 = vmatprep.subr.bf16.mxu0 0
    %420 = vmatpush2.bf16.msra.mxu0 0
    %421 = vmatprep.subr.bf16.mxu0 0
    %422 = vmatpush2.bf16.msra.mxu0 0
    %423 = vmatprep.subr.bf16.mxu0 0
    %424 = vmatpush2.bf16.msra.mxu0 0
    %425 = vmatprep.subr.bf16.mxu0 0
    %426 = vmatpush2.bf16.msra.mxu0 0
    %427 = vmatprep.subr.bf16.mxu0 0
    %428 = vmatpush2.bf16.msra.mxu0 0
    %429 = vmatprep.mubr.bf16.mxu0 0
    %430 = vmatmul.mubr.bf16.gmra.mxu0 %v395
    %v431 = vpop.f32.mrf.mxu0
    %v432 = vadd.f32 0.0, %v431
    %v433 = vpop.f32.mrf.mxu0
    %v434 = vpop.f32.mrf.mxu0
    %v435 = vadd.f32 0.0, %v434
    %v436 = vpop.f32.mrf.mxu0
    %437 = vdwg.mxu0
    %438 = vst [vmem:[#allocation9] sm:$0xff] %v432
    %439 = vst [vmem:[#allocation9 + $0x8] sm:$0xff] %v435
    // Predicated region
    $region26: #{tpu_custom_call.1} parent=1 // pred_check
      _
    $region27: #{tpu_custom_call.1} parent=1 // pred_check_branch
      %441 = sbr.rel (0) target = $region29
    $region28: #{tpu_custom_call.1} parent=1 // pred_region
      %s443 = ssub.s32 256, 256
      %444 = vsyncadd [#allocation4], %s443
      %s445 = sshll.u32 [#allocation8], 4
      %s446 = int_to_ptr.vmem [resolvable:$true] %s445
      %451 = dma.vmem_to_hbm [thread:$0]  %s446, 256, %s3, [#allocation4], 128, 128, 8
    $region29: #{tpu_custom_call.1} parent=1 // pred_fallthru
      _
    // Predicated region
    $region30: #{tpu_custom_call.1} parent=1 // pred_check
      _
    $region31: #{tpu_custom_call.1} parent=1 // pred_check_branch
      %453 = sbr.rel (0) target = $region33
    $region32: #{tpu_custom_call.1} parent=1 // pred_region
      %s455 = ssub.s32 256, 256
      %456 = vsyncadd [#allocation10], %s455
      %s457 = sshll.u32 [#allocation9], 4
      %s458 = int_to_ptr.vmem [resolvable:$true] %s457
      %463 = dma.vmem_to_hbm [thread:$0]  %s458, 256, %s4, [#allocation10], 128, 128, 8
    $region33: #{tpu_custom_call.1} parent=1 // pred_fallthru
      _
    // Predicated region
    $region34: #{tpu_custom_call.1} parent=1 // pred_check
      _
    $region35: #{tpu_custom_call.1} parent=1 // pred_check_branch
      %465 = sbr.rel (0) target = $region37
    $region36: #{tpu_custom_call.1} parent=1 // pred_region
      %466 = dma.done [#allocation4], 256
    $region37: #{tpu_custom_call.1} parent=1 // pred_fallthru
      _
    // Predicated region
    $region38: #{tpu_custom_call.1} parent=1 // pred_check
      _
    $region39: #{tpu_custom_call.1} parent=1 // pred_check_branch
      %468 = sbr.rel (0) target = $region41
    $region40: #{tpu_custom_call.1} parent=1 // pred_region
      %469 = dma.done [#allocation10], 256
    $region41: #{tpu_custom_call.1} parent=1 // pred_fallthru
      _
    %470 = vsyncpa [#allocation3], 1
    %471 = vsyncpa [#allocation6], 1
    %472 = vsyncpa [#allocation4], 1
    %473 = vsyncpa [#allocation10], 1

</llo_original>
